<compile_context>
chip_gen: v7x
topology: tpu7x:2x2x1
jax: 0.10.0
libtpu: 0.0.40
codegen_flags: <defaults>
</compile_context>

<pallas_src>
import math

import jax
import jax.numpy as jnp
import numpy as np
from jax.experimental import pallas as pl
from jax.experimental.pallas import tpu as pltpu

LANE = 128


def translator_kernel(x_ref, wc_ref, p_ref, scale_ref, out_ref):
    # x_ref    : (B*S, cin+1)  flattened [batch, seq] rows; last column = 1.0 (bias fold)
    # wc_ref   : (cin+1, Cpad) fused W1^T @ W2^T, last row = fused bias, zero-padded lanes
    # p_ref    : (2B, B*S)     pool + repeat(2,1) matrix, entries 1/S
    # scale_ref: (1, Cpad)     per-output-column range scale, zero-padded lanes
    # out_ref  : (2B, Cpad)    lane-dense output (wrapper slices [:, :cout])
    y = jnp.tanh(jnp.dot(x_ref[...], wc_ref[...],
                         preferred_element_type=jnp.float32))        # MXU + EUP
    out_ref[...] = (jnp.dot(p_ref[...], y,
                            preferred_element_type=jnp.float32)       # tiny MXU pool
                    * scale_ref[...])                                 # one VPU mul, one full store


def fuse_params(w1, b1, w2, b2, *, B, S,
                xyz_rotation_range=90.0,
                xy_translation_range=0.1,
                z_translation_range=0.1):
    """One-time constant preprocessing (hoisted out of the per-call hot path).

    w1: (nf, cin), b1: (nf,), w2: (cout, nf), b2: (cout,)  [torch layouts]
    Returns wc_aug (cin+1, Cpad), pool (2B, B*S), scale (1, Cpad), Cpad.
    """
    cout = w2.shape[0]
    assert cout >= 6, "view vector expects >= 6 outputs (3 rot, 2 xy, >=1 z)"
    cpad = ((cout + LANE - 1) // LANE) * LANE                 # lane-dense output width

    # Fuse the two Linears (no nonlinearity between them) and fold the bias
    # into an extra row of Wc (paired with a ones column appended to x).
    wc = jnp.dot(w1.T, w2.T)                                   # (cin, cout)
    bc = jnp.dot(b1, w2.T) + b2                                # (cout,)
    wc_aug = jnp.concatenate([wc, bc[None, :]], axis=0)        # (cin+1, cout)
    wc_aug = jnp.pad(wc_aug, ((0, 0), (0, cpad - cout)))       # (cin+1, Cpad)

    # Column-wise scale reproducing the torch.cat of scaled slices.
    scale_np = np.zeros((1, cpad), np.float32)
    scale_np[0, :3] = math.pi / 180.0 * xyz_rotation_range
    scale_np[0, 3:5] = xy_translation_range
    scale_np[0, 5:cout] = z_translation_range

    # Pool (mean over seq, 1/S folded in) + repeat(2, 1) as one constant matrix.
    p_np = np.zeros((2 * B, B * S), np.float32)
    for r in range(2 * B):
        b = r % B
        p_np[r, b * S:(b + 1) * S] = 1.0 / S

    return (wc_aug.astype(jnp.float32), jnp.asarray(p_np),
            jnp.asarray(scale_np), cpad)


def translator_nn_view_forward(x, wc_aug, pool, scale, cout):
    """x: (B, S, cin) float32. Returns (2B, cout) float32 (global_flag=False)."""
    B, S, cin = x.shape
    cpad = wc_aug.shape[1]
    x_aug = jnp.concatenate(
        [x.reshape(B * S, cin), jnp.ones((B * S, 1), x.dtype)], axis=1)  # (B*S, cin+1)

    vmem = pl.BlockSpec(memory_space=pltpu.MemorySpace.VMEM)
    flops = 2 * (B * S) * (cin + 1) * cpad + 2 * (2 * B) * (B * S) * cpad
    bytes_accessed = 4 * (x_aug.size + wc_aug.size + pool.size
                          + scale.size + (2 * B) * cpad)

    out = pl.pallas_call(
        translator_kernel,
        out_shape=jax.ShapeDtypeStruct((2 * B, cpad), jnp.float32),
        in_specs=[vmem, vmem, vmem, vmem],
        out_specs=vmem,
        cost_estimate=pl.CostEstimate(
            flops=flops,
            transcendentals=(B * S) * cpad,
            bytes_accessed=bytes_accessed),
    )(x_aug, wc_aug, pool, scale)
    return out[:, :cout]


def reference_forward(x, w1, b1, w2, b2, *,
                      xyz_rotation_range=90.0,
                      xy_translation_range=0.1,
                      z_translation_range=0.1):
    h = jnp.einsum("bsc,nc->bsn", x, w1) + b1
    y = jnp.tanh(jnp.einsum("bsn,on->bso", h, w2) + b2)
    views = jnp.mean(y, axis=1)
    views = jnp.concatenate([views, views], axis=0)
    views = jnp.concatenate([
        views[:, :3] * math.pi / 180.0 * xyz_rotation_range,
        views[:, 3:5] * xy_translation_range,
        views[:, 5:] * z_translation_range,
    ], axis=1)
    return views


if __name__ == "__main__":
    # Small shapes consistent with the module: Linear(cin, nf) -> Linear(nf, cout=6).
    B, S, cin, nf, cout = 2, 8, 16, 32, 6

    key = jax.random.PRNGKey(0)
    kx, kw1, kw2 = jax.random.split(key, 3)

    x = jax.random.normal(kx, (B, S, cin), dtype=jnp.float32)

    # Deterministic init matching nn.init.normal_(0, 0.01) / constant_(bias, 0).
    w1 = 0.01 * jax.random.normal(kw1, (nf, cin), dtype=jnp.float32)   # torch layout (out, in)
    b1 = jnp.zeros((nf,), dtype=jnp.float32)
    w2 = 0.01 * jax.random.normal(kw2, (cout, nf), dtype=jnp.float32)
    b2 = jnp.zeros((cout,), dtype=jnp.float32)

    # One-time fusion of the two Linears + bias fold + pool/scale constants.
    wc_aug, pool, scale, _ = fuse_params(w1, b1, w2, b2, B=B, S=S)

    out = translator_nn_view_forward(x, wc_aug, pool, scale, cout)
    out = jax.block_until_ready(out)

    ref = jax.block_until_ready(reference_forward(x, w1, b1, w2, b2))
    np.testing.assert_allclose(np.asarray(out), np.asarray(ref), rtol=1e-5, atol=1e-6)

    assert out.shape == (2 * B, cout)
    print("KERNEL_OK")
</pallas_src>

<mosaic_0001>
module attributes {stable_mosaic.version = 11 : i64} {
  func.func @translator_kernel(%arg0: memref<16x17xf32, #tpu.memory_space<vmem>>, %arg1: memref<17x128xf32, #tpu.memory_space<vmem>>, %arg2: memref<4x16xf32, #tpu.memory_space<vmem>>, %arg3: memref<1x128xf32, #tpu.memory_space<vmem>>, %arg4: memref<4x128xf32, #tpu.memory_space<vmem>>) attributes {dimension_semantics = [], scalar_prefetch = 0 : i64, scratch_operands = 0 : i64, tpu.core_type = #tpu.core_type<tc>} {
    %c0 = arith.constant 0 : index
    %c0_0 = arith.constant 0 : index
    %0 = vector.load %arg0[%c0, %c0_0] : memref<16x17xf32, #tpu.memory_space<vmem>>, vector<16x17xf32>
    %c0_1 = arith.constant 0 : index
    %c0_2 = arith.constant 0 : index
    %1 = vector.load %arg1[%c0_1, %c0_2] : memref<17x128xf32, #tpu.memory_space<vmem>>, vector<17x128xf32>
    %cst = arith.constant dense<0.000000e+00> : vector<16x128xf32>
    %2 = tpu.matmul %0, %1, %cst {dimension_numbers = #tpu.dot_dimension_numbers<[1], [0], [0], [1], [0, 0, 1, 1], [], []>} : vector<16x17xf32>, vector<17x128xf32>, vector<16x128xf32> -> vector<16x128xf32>
    %3 = math.tanh %2 : vector<16x128xf32>
    %c0_3 = arith.constant 0 : index
    %c0_4 = arith.constant 0 : index
    %4 = vector.load %arg2[%c0_3, %c0_4] : memref<4x16xf32, #tpu.memory_space<vmem>>, vector<4x16xf32>
    %cst_5 = arith.constant dense<0.000000e+00> : vector<4x128xf32>
    %5 = tpu.matmul %4, %3, %cst_5 {dimension_numbers = #tpu.dot_dimension_numbers<[1], [0], [0], [1], [0, 0, 1, 1], [], []>} : vector<4x16xf32>, vector<16x128xf32>, vector<4x128xf32> -> vector<4x128xf32>
    %c0_6 = arith.constant 0 : index
    %c0_7 = arith.constant 0 : index
    %6 = vector.load %arg3[%c0_6, %c0_7] : memref<1x128xf32, #tpu.memory_space<vmem>>, vector<1x128xf32>
    %7 = vector.broadcast %6 : vector<1x128xf32> to vector<4x128xf32>
    %8 = arith.mulf %5, %7 : vector<4x128xf32>
    %c0_8 = arith.constant 0 : index
    %c0_9 = arith.constant 0 : index
    %9 = vector.load %arg4[%c0_8, %c0_9] : memref<4x128xf32, #tpu.memory_space<vmem>>, vector<4x128xf32>
    tpu.vector_store %arg4[%c0_8, %c0_9], %8 {strides = array<i32>} : memref<4x128xf32, #tpu.memory_space<vmem>>, vector<4x128xf32>,
    return
  }
}

</mosaic_0001>

<llo_original>
// kernel: tpu_custom_call.1
$region0: #{tpu_custom_call.1}
  #allocation0 [shape = 'u32[]', space=smem, size = 0x4, offset = 0x4, fixed_abs, tag = 'smem constant byte address 0x4 - core index']
  #allocation1 [shape = 'u32[144,128]{1,0:T(1,128)}', space=vmem, size = 0x12000, scoped, tag = 'internal scratch']
  %s0 = inlined_call_operand.hbm [shape: f32[16,17], index: 0, kind: input, shape index: {}]
  %s1 = inlined_call_operand.hbm [shape: f32[17,128], index: 1, kind: input, shape index: {}]
  %s2 = inlined_call_operand.vmem [shape: f32[4,16], index: 2, kind: input, shape index: {}]
  %s3 = inlined_call_operand.vmem [shape: f32[1,128], index: 3, kind: input, shape index: {}]
  %s4 = inlined_call_operand.hbm [shape: f32[4,128], index: 4, kind: output, shape index: {}]
  %s5 = sld [smem:[#allocation0]]
  $region34: #{tpu_custom_call.1} parent=0
    _
  %s7 = ssub.s32 1, %s5
  %s8 = scalar_select 0, %s7, %s5
  $region1: #{tpu_custom_call.1} parent=0
    #allocation2 [shape = 'u8[8192]{0}', space=vmem, size = 0x2000, scoped, tag = 'input window, operand 0, single buffered']
    #allocation3 [shape = 's32[1]{0}', space=sflag, size = 0x4, scoped, tag = 'scoped memory for tpu_custom_call.1']
    #allocation4 [shape = 's32[1]{0}', space=sflag, size = 0x4, scoped, tag = 'scoped memory for tpu_custom_call.1']
    #allocation5 [shape = 'u8[12288]{0}', space=vmem, size = 0x3000, scoped, tag = 'input window, operand 1, single buffered']
    #allocation6 [shape = 's32[1]{0}', space=sflag, size = 0x4, scoped, tag = 'scoped memory for tpu_custom_call.1']
    #allocation7 [shape = 'u8[2048]{0}', space=vmem, size = 0x800, scoped, tag = 'output window, operand 0, single buffered']
    %9 = vsyncpa [#allocation3], 0
    %10 = vsyncpa [#allocation6], 0
    %11 = vsyncpa [#allocation4], 0
    // Predicated region
    $region2: #{tpu_custom_call.1} parent=1 // pred_check
      _
    $region3: #{tpu_custom_call.1} parent=1 // pred_check_branch
      %13 = sbr.rel (0) target = $region5
    $region4: #{tpu_custom_call.1} parent=1 // pred_region
      %s15 = ssub.s32 256, 256
      %16 = vsyncadd [#allocation3], %s15
      %s17 = sshll.u32 [#allocation2], 4
      %s18 = int_to_ptr.vmem [resolvable:$true] %s17
      %23 = dma.hbm_to_vmem [thread:$0]  %s0, 256, %s18, [#allocation3], 128, 128, 8
    $region5: #{tpu_custom_call.1} parent=1 // pred_fallthru
      _
    // Predicated region
    $region6: #{tpu_custom_call.1} parent=1 // pred_check
      _
    $region7: #{tpu_custom_call.1} parent=1 // pred_check_branch
      %25 = sbr.rel (0) target = $region9
    $region8: #{tpu_custom_call.1} parent=1 // pred_region
      %s27 = ssub.s32 384, 384
      %28 = vsyncadd [#allocation6], %s27
      %s29 = sshll.u32 [#allocation5], 4
      %s30 = int_to_ptr.vmem [resolvable:$true] %s29
      %35 = dma.hbm_to_vmem [thread:$0]  %s1, 384, %s30, [#allocation6], 128, 128, 8
    $region9: #{tpu_custom_call.1} parent=1 // pred_fallthru
      _
    // Predicated region
    $region10: #{tpu_custom_call.1} parent=1 // pred_check
      _
    $region11: #{tpu_custom_call.1} parent=1 // pred_check_branch
      %37 = sbr.rel (0) target = $region13
    $region12: #{tpu_custom_call.1} parent=1 // pred_region
      _
    $region13: #{tpu_custom_call.1} parent=1 // pred_fallthru
      _
    // Predicated region
    $region14: #{tpu_custom_call.1} parent=1 // pred_check
      _
    $region15: #{tpu_custom_call.1} parent=1 // pred_check_branch
      %39 = sbr.rel (0) target = $region17
    $region16: #{tpu_custom_call.1} parent=1 // pred_region
      _
    $region17: #{tpu_custom_call.1} parent=1 // pred_fallthru
      _
    // Predicated region
    $region18: #{tpu_custom_call.1} parent=1 // pred_check
      _
    $region19: #{tpu_custom_call.1} parent=1 // pred_check_branch
      %41 = sbr.rel (0) target = $region21
    $region20: #{tpu_custom_call.1} parent=1 // pred_region
      %42 = dma.done [#allocation3], 256
    $region21: #{tpu_custom_call.1} parent=1 // pred_fallthru
      _
    // Predicated region
    $region22: #{tpu_custom_call.1} parent=1 // pred_check
      _
    $region23: #{tpu_custom_call.1} parent=1 // pred_check_branch
      %44 = sbr.rel (0) target = $region25
    $region24: #{tpu_custom_call.1} parent=1 // pred_region
      %45 = dma.done [#allocation6], 384
    $region25: #{tpu_custom_call.1} parent=1 // pred_fallthru
      _
    %v46 = vld [vmem:[#allocation2] sm:$0xff]
    %v47 = vld [vmem:[#allocation2 + $0x8] sm:$0xff]
    %v48 = vld [vmem:[#allocation5] sm:$0xff]
    %v49 = vld [vmem:[#allocation5 + $0x8] sm:$0xff]
    %v50 = vld [vmem:[#allocation5 + $0x10] sm:$0x1]
    %vm51 = vcmask 138240
    %v53 = vsel %vm51, %v46, 0
    %v56 = vsel %vm51, %v47, 0
    %vm58 = vcmask 1040384
    %v60 = vsel %vm58, %v50, 0
    %62 = vmatprep.subr.mxu0 0.0
    %63 = vmatpush1.msra.mxu0 %v48
    %64 = vmatprep.subr.mxu0 0.0
    %65 = vmatpush1.msra.mxu0 %v49
    %66 = vmatprep.subr.mxu0 0.0
    %67 = vmatpush1.msra.mxu0 %v60
    %68 = vmatprep.subr.mxu0 0.0
    %69 = vmatpush1.msra.mxu0 0.0
    %70 = vmatprep.subr.mxu0 0.0
    %71 = vmatpush1.msra.mxu0 0.0
    %72 = vmatprep.subr.mxu0 0.0
    %73 = vmatpush1.msra.mxu0 0.0
    %74 = vmatprep.subr.mxu0 0.0
    %75 = vmatpush1.msra.mxu0 0.0
    %76 = vmatprep.subr.mxu0 0.0
    %77 = vmatpush1.msra.mxu0 0.0
    %78 = vmatprep.subr.mxu0 0.0
    %79 = vmatpush1.msra.mxu0 0.0
    %80 = vmatprep.subr.mxu0 0.0
    %81 = vmatpush1.msra.mxu0 0.0
    %82 = vmatprep.subr.mxu0 0.0
    %83 = vmatpush1.msra.mxu0 0.0
    %84 = vmatprep.subr.mxu0 0.0
    %85 = vmatpush1.msra.mxu0 0.0
    %86 = vmatprep.subr.mxu0 0.0
    %87 = vmatpush1.msra.mxu0 0.0
    %88 = vmatprep.subr.mxu0 0.0
    %89 = vmatpush1.msra.mxu0 0.0
    %90 = vmatprep.subr.mxu0 0.0
    %91 = vmatpush1.msra.mxu0 0.0
    %92 = vmatprep.subr.mxu0 0.0
    %93 = vmatpush1.msra.mxu0 0.0
    %94 = vmatprep.subr.mxu0 0.0
    %95 = vmatpush1.msra.mxu0 0.0
    %96 = vmatprep.subr.mxu0 0.0
    %97 = vmatpush1.msra.mxu0 0.0
    %98 = vmatprep.subr.mxu0 0.0
    %99 = vmatpush1.msra.mxu0 0.0
    %100 = vmatprep.subr.mxu0 0.0
    %101 = vmatpush1.msra.mxu0 0.0
    %102 = vmatprep.subr.mxu0 0.0
    %103 = vmatpush1.msra.mxu0 0.0
    %104 = vmatprep.subr.mxu0 0.0
    %105 = vmatpush1.msra.mxu0 0.0
    %106 = vmatprep.subr.mxu0 0.0
    %107 = vmatpush1.msra.mxu0 0.0
    %108 = vmatprep.subr.mxu0 0.0
    %109 = vmatpush1.msra.mxu0 0.0
    %110 = vmatprep.subr.mxu0 0.0
    %111 = vmatpush1.msra.mxu0 0.0
    %112 = vmatprep.subr.mxu0 0.0
    %113 = vmatpush1.msra.mxu0 0.0
    %114 = vmatprep.subr.mxu0 0.0
    %115 = vmatpush1.msra.mxu0 0.0
    %116 = vmatprep.subr.mxu0 0.0
    %117 = vmatpush1.msra.mxu0 0.0
    %118 = vmatprep.subr.mxu0 0.0
    %119 = vmatpush1.msra.mxu0 0.0
    %120 = vmatprep.subr.mxu0 0.0
    %121 = vmatpush1.msra.mxu0 0.0
    %122 = vmatprep.subr.mxu0 0.0
    %123 = vmatpush1.msra.mxu0 0.0
    %124 = vmatprep.subr.mxu0 0.0
    %125 = vmatpush1.msra.mxu0 0.0
    %126 = vmatprep.mubr.f32.mxu0 0.0
    %127 = vmatmul.mubr.f32.gmra.mrb[0].mxu0 %v53
    %v128 = vpop.f32.mrb[0].mxu0
    %v129 = vadd.f32 0.0, %v128
    %v130 = vpop.f32.mrb[0].mxu0
    %131 = vmatprep.mubr.f32.mxu0 0.0
    %132 = vmatmul.mubr.f32.gmra.mrb[0].mxu0 %v56
    %v133 = vpop.f32.mrb[0].mxu0
    %v134 = vadd.f32 0.0, %v133
    %v135 = vpop.f32.mrb[0].mxu0
    %136 = vdwg.mxu0
    %v137 = vtanh.pop %v129
    %v138 = vtanh.pop %v134
    %v139 = vld [vmem:[%s2] sm:$0xf]
    %vm140 = vcmask 130048
    %v142 = vsel %vm140, %v139, 0
    %144 = vmatprep.subr.mxu0 0.0
    %145 = vmatpush1.msra.mxu0 %v137
    %146 = vmatprep.subr.mxu0 0.0
    %147 = vmatpush1.msra.mxu0 %v138
    %148 = vmatprep.subr.mxu0 0.0
    %149 = vmatpush1.msra.mxu0 0.0
    %150 = vmatprep.subr.mxu0 0.0
    %151 = vmatpush1.msra.mxu0 0.0
    %152 = vmatprep.subr.mxu0 0.0
    %153 = vmatpush1.msra.mxu0 0.0
    %154 = vmatprep.subr.mxu0 0.0
    %155 = vmatpush1.msra.mxu0 0.0
    %156 = vmatprep.subr.mxu0 0.0
    %157 = vmatpush1.msra.mxu0 0.0
    %158 = vmatprep.subr.mxu0 0.0
    %159 = vmatpush1.msra.mxu0 0.0
    %160 = vmatprep.subr.mxu0 0.0
    %161 = vmatpush1.msra.mxu0 0.0
    %162 = vmatprep.subr.mxu0 0.0
    %163 = vmatpush1.msra.mxu0 0.0
    %164 = vmatprep.subr.mxu0 0.0
    %165 = vmatpush1.msra.mxu0 0.0
    %166 = vmatprep.subr.mxu0 0.0
    %167 = vmatpush1.msra.mxu0 0.0
    %168 = vmatprep.subr.mxu0 0.0
    %169 = vmatpush1.msra.mxu0 0.0
    %170 = vmatprep.subr.mxu0 0.0
    %171 = vmatpush1.msra.mxu0 0.0
    %172 = vmatprep.subr.mxu0 0.0
    %173 = vmatpush1.msra.mxu0 0.0
    %174 = vmatprep.subr.mxu0 0.0
    %175 = vmatpush1.msra.mxu0 0.0
    %176 = vmatprep.subr.mxu0 0.0
    %177 = vmatpush1.msra.mxu0 0.0
    %178 = vmatprep.subr.mxu0 0.0
    %179 = vmatpush1.msra.mxu0 0.0
    %180 = vmatprep.subr.mxu0 0.0
    %181 = vmatpush1.msra.mxu0 0.0
    %182 = vmatprep.subr.mxu0 0.0
    %183 = vmatpush1.msra.mxu0 0.0
    %184 = vmatprep.subr.mxu0 0.0
    %185 = vmatpush1.msra.mxu0 0.0
    %186 = vmatprep.subr.mxu0 0.0
    %187 = vmatpush1.msra.mxu0 0.0
    %188 = vmatprep.subr.mxu0 0.0
    %189 = vmatpush1.msra.mxu0 0.0
    %190 = vmatprep.subr.mxu0 0.0
    %191 = vmatpush1.msra.mxu0 0.0
    %192 = vmatprep.subr.mxu0 0.0
    %193 = vmatpush1.msra.mxu0 0.0
    %194 = vmatprep.subr.mxu0 0.0
    %195 = vmatpush1.msra.mxu0 0.0
    %196 = vmatprep.subr.mxu0 0.0
    %197 = vmatpush1.msra.mxu0 0.0
    %198 = vmatprep.subr.mxu0 0.0
    %199 = vmatpush1.msra.mxu0 0.0
    %200 = vmatprep.subr.mxu0 0.0
    %201 = vmatpush1.msra.mxu0 0.0
    %202 = vmatprep.subr.mxu0 0.0
    %203 = vmatpush1.msra.mxu0 0.0
    %204 = vmatprep.subr.mxu0 0.0
    %205 = vmatpush1.msra.mxu0 0.0
    %206 = vmatprep.subr.mxu0 0.0
    %207 = vmatpush1.msra.mxu0 0.0
    %208 = vmatprep.mubr.f32.mxu0 0.0
    %209 = vmatmul.mubr.f32.gmra.mrb[0].mxu0 %v142
    %v210 = vpop.f32.mrb[0].mxu0
    %v211 = vadd.f32 0.0, %v210
    %v212 = vpop.f32.mrb[0].mxu0
    %213 = vdwg.mxu0
    %v214 = vld [vmem:[%s3] sm:$0x1]
    %v216 = vlaneseq
    %v217 = vshrl.u32 %v216, 7
    %v218 = vsub.s32 0, %v217
    %v219 = vrot.slane %v214, %v218
    %v221 = vmul.f32 %v211, %v219
    %222 = vst [vmem:[#allocation7] sm:$0xf] %v221
    // Predicated region
    $region26: #{tpu_custom_call.1} parent=1 // pred_check
      _
    $region27: #{tpu_custom_call.1} parent=1 // pred_check_branch
      %224 = sbr.rel (0) target = $region29
    $region28: #{tpu_custom_call.1} parent=1 // pred_region
      %s226 = ssub.s32 64, 64
      %227 = vsyncadd [#allocation4], %s226
      %s229 = sshll.u32 [#allocation7], 4
      %s230 = int_to_ptr.vmem [resolvable:$true] %s229
      %232 = dma.vmem_to_hbm [thread:$0]  %s230, 64, %s4, [#allocation4]
    $region29: #{tpu_custom_call.1} parent=1 // pred_fallthru
      _
    // Predicated region
    $region30: #{tpu_custom_call.1} parent=1 // pred_check
      _
    $region31: #{tpu_custom_call.1} parent=1 // pred_check_branch
      %234 = sbr.rel (0) target = $region33
    $region32: #{tpu_custom_call.1} parent=1 // pred_region
      %235 = dma.done [#allocation4], 64
    $region33: #{tpu_custom_call.1} parent=1 // pred_fallthru
      _
    %236 = vsyncpa [#allocation3], 1
    %237 = vsyncpa [#allocation6], 1
    %238 = vsyncpa [#allocation4], 1

</llo_original>
